<compile_context>
chip_gen: v5e
topology: v5e:2x2
jax: 0.10.0
libtpu: 0.0.40
codegen_flags: <defaults>
</compile_context>

<pallas_src>
import numpy as np
import jax
import jax.numpy as jnp
from jax.experimental import pallas as pl
from jax.experimental.pallas import tpu as pltpu


def _round_up(x: int, m: int) -> int:
    return ((x + m - 1) // m) * m


def _make_fused_kernel(Bt: int, L: int, kmax: int, F_pad: int):
    """Bt examples per grid step, L = T + kmax - 1 conv positions per example."""
    M = L * Bt  # rows per tap matmul (multiple of 8 because Bt is)

    def kernel(x_ref, wbig_ref, bbig_ref, start_ref, fcw_ref, fcb_ref, o_ref):
        # x_ref:     (T_row, Bt, C_pad)  time-major, zero padded (kmax-1 zeros
        #                                 before/after the T data rows)
        # wbig_ref:  (kmax, C_pad, F_pad) per-tap stacked conv weights
        # bbig_ref:  (1, F_pad)           concatenated conv biases (zero pad)
        # start_ref: (1, F_pad) int32     first valid unified position / channel
        # fcw_ref:   (F_pad, F_pad)       fc weight, pre-transposed + zero pad
        # fcb_ref:   (1, F_pad)
        # o_ref:     (Bt, F_pad)
        C_pad = x_ref.shape[-1]

        # Per-tap MXU accumulation: one (M, C_pad) @ (C_pad, F_pad) dot per tap,
        # all branches handled at once through the channel stacking in wbig.
        acc = jnp.zeros((M, F_pad), jnp.float32)
        for j in range(kmax):                       # static unroll, kmax is tiny
            xs = x_ref[j:j + L, :, :].reshape(M, C_pad)
            acc = acc + jnp.dot(xs, wbig_ref[j],
                                preferred_element_type=jnp.float32)
        acc = jnp.maximum(acc + bbig_ref[...], 0.0)          # bias + ReLU

        # Validity mask: row r = t*Bt + b is a real conv output for channel c
        # iff t >= start[c]  <=>  r >= Bt*start[c].  Invalid rows are all-zero
        # windows (artifacts of the shared kmax-1 padding) whose value is
        # ReLU(bias); masking them to 0 is exact ONLY because ReLU guarantees
        # the true per-channel max is >= 0 (if the activation changes, this
        # must become -inf).
        row = jax.lax.broadcasted_iota(jnp.int32, (M, F_pad), 0)
        valid = row >= start_ref[...] * Bt
        masked = jnp.where(valid, acc, 0.0)

        # Vectorized max-over-time for all Bt examples at once: split the row
        # dim (t-major) and reduce over the leading axis. Stays in VMEM.
        pooled = jnp.max(masked.reshape(L, Bt, F_pad), axis=0)   # (Bt, F_pad)

        # Fused FC. Zero-padded rows/cols of fcw keep the padded channels inert.
        o_ref[...] = (
            jnp.dot(pooled, fcw_ref[...], preferred_element_type=jnp.float32)
            + fcb_ref[...]
        )

    return kernel


class ContextualWordConvolutionPallas:
    def __init__(self, in_channels, out_channels, kernel_sizes, key):
        self.in_channels = in_channels
        self.out_channels = out_channels
        self.kernel_sizes = list(kernel_sizes)
        self.kmax = max(self.kernel_sizes)
        self.F = len(self.kernel_sizes) * out_channels
        # Lane-padded dims (perf review item 1).
        self.C_pad = _round_up(max(in_channels, 128), 128)
        self.F_pad = _round_up(max(self.F, 128), 128)

        keys = jax.random.split(key, 2 * len(self.kernel_sizes) + 2)
        # Torch-layout parameters (used by the independent reference).
        self.conv_w = []   # (C_out, C_in, k)
        self.conv_b = []
        for i, k in enumerate(self.kernel_sizes):
            bound = 1.0 / (in_channels * k) ** 0.5
            w = jax.random.uniform(keys[2 * i], (out_channels, in_channels, k),
                                   jnp.float32, -bound, bound)
            b = jax.random.uniform(keys[2 * i + 1], (out_channels,),
                                   jnp.float32, -bound, bound)
            self.conv_w.append(w)
            self.conv_b.append(b)

        fbound = 1.0 / self.F ** 0.5
        self.fc_w = jax.random.uniform(keys[-2], (self.F, self.F),
                                       jnp.float32, -fbound, fbound)
        self.fc_b = jax.random.uniform(keys[-1], (self.F,),
                                       jnp.float32, -fbound, fbound)

        # ---- precompute lane-padded kernel operands ONCE ----
        kmax, C_in, C_out = self.kmax, in_channels, out_channels
        C_pad, F_pad, F = self.C_pad, self.F_pad, self.F

        wbig = np.zeros((kmax, C_pad, F_pad), np.float32)   # (tap, C_pad, F_pad)
        starts = np.zeros((1, F_pad), np.int32)
        bbig = np.zeros((1, F_pad), np.float32)
        for i, k in enumerate(self.kernel_sizes):
            w = np.asarray(self.conv_w[i])                  # (C_out, C_in, k)
            for j in range(k):
                wbig[j, :C_in, i * C_out:(i + 1) * C_out] = w[:, :, j].T
            starts[0, i * C_out:(i + 1) * C_out] = kmax - k
            bbig[0, i * C_out:(i + 1) * C_out] = np.asarray(self.conv_b[i])

        fcw = np.zeros((F_pad, F_pad), np.float32)
        fcw[:F, :F] = np.asarray(self.fc_w).T               # pre-transposed
        fcb = np.zeros((1, F_pad), np.float32)
        fcb[0, :F] = np.asarray(self.fc_b)

        self.wbig = jnp.asarray(wbig)
        self.start = jnp.asarray(starts)
        self.bbig = jnp.asarray(bbig)
        self.fc_wT = jnp.asarray(fcw)
        self.fc_b2d = jnp.asarray(fcb)

    def _choose_bt(self, B, T_row, L):
        """Pick Bt (multiple of 8) so M = Bt*L is ~1k rows, under a VMEM budget."""
        C_pad, F_pad, kmax = self.C_pad, self.F_pad, self.kmax
        TARGET_M = 1024
        bt = _round_up(max(8, -(-TARGET_M // max(L, 1))), 8)
        bt = min(bt, _round_up(B, 8))          # never pad the batch beyond need

        def est_bytes(btv):                    # rough per-step VMEM footprint
            xblk = T_row * btv * C_pad * 4     # input block (double-buffered)
            acc = L * btv * (F_pad + C_pad) * 4  # accumulator + one tap slice
            outb = btv * F_pad * 4
            const = (kmax * C_pad * F_pad + F_pad * F_pad + 3 * F_pad) * 4
            return 2 * xblk + acc + 2 * outb + 2 * const

        while bt > 8 and est_bytes(bt) > 24 * 1024 * 1024:   # fits v7x 64 MiB/TC
            bt -= 8
        return bt

    def __call__(self, words):
        # words: (B, T, C_in) float32
        B, T, C_in = words.shape
        kmax, F, F_pad, C_pad = self.kmax, self.F, self.F_pad, self.C_pad
        L = T + kmax - 1                      # conv output length (all branches)
        T_row = T + 2 * (kmax - 1)            # shared zero-padded time extent

        Bt = self._choose_bt(B, T_row, L)
        num_blocks = -(-B // Bt)              # no forced multi-block split
        B_pad = Bt * num_blocks

        # Time-major padded slab (T_row, B_pad, C_pad): kmax-1 zeros on each
        # side in time, batch rounded to Bt, channels lane-padded.
        # TODO(synk): this pad+transpose is one extra XLA HBM copy; it could be
        # built in-kernel from the raw (B,T,C_in) block via a VMEM scratch if
        # the input traffic ever matters (small T inflates it ~2x).
        x = jnp.transpose(words, (1, 0, 2))
        x = jnp.pad(x, ((kmax - 1, kmax - 1), (0, B_pad - B), (0, C_pad - C_in)))

        out = pl.pallas_call(
            _make_fused_kernel(Bt, L, kmax, F_pad),
            out_shape=jax.ShapeDtypeStruct((B_pad, F_pad), jnp.float32),
            grid=(num_blocks,),
            in_specs=[
                pl.BlockSpec((T_row, Bt, C_pad), lambda g: (0, g, 0)),
                pl.BlockSpec((kmax, C_pad, F_pad), lambda g: (0, 0, 0)),
                pl.BlockSpec((1, F_pad), lambda g: (0, 0)),
                pl.BlockSpec((1, F_pad), lambda g: (0, 0)),
                pl.BlockSpec((F_pad, F_pad), lambda g: (0, 0)),
                pl.BlockSpec((1, F_pad), lambda g: (0, 0)),
            ],
            out_specs=pl.BlockSpec((Bt, F_pad), lambda g: (g, 0)),
            compiler_params=pltpu.CompilerParams(
                dimension_semantics=("parallel",),
                vmem_limit_bytes=48 * 1024 * 1024),
        )(x, self.wbig, self.bbig, self.start, self.fc_wT, self.fc_b2d)

        # Padded batch rows / padded channels are garbage-by-construction and
        # are discarded here.
        return out[:B, :F]

    # Independent pure-JAX reference built directly from the torch-layout
    # weights (also verifies the (C_out,C_in,k) -> per-tap stacking transform).
    def reference(self, words):
        x = jnp.transpose(words, (0, 2, 1))                  # (B, C_in, T)
        outs = []
        for i, k in enumerate(self.kernel_sizes):
            y = jax.lax.conv_general_dilated(
                x, self.conv_w[i], window_strides=(1,),
                padding=[(k - 1, k - 1)],
                dimension_numbers=('NCH', 'OIH', 'NCH'),
                precision=jax.lax.Precision.HIGHEST)
            y = jnp.maximum(y + self.conv_b[i][None, :, None], 0.0)
            outs.append(jnp.max(y, axis=2))
        cat = jnp.concatenate(outs, axis=1)
        return (jnp.dot(cat, self.fc_w.T, precision=jax.lax.Precision.HIGHEST)
                + self.fc_b[None, :])


if __name__ == "__main__":
    key = jax.random.PRNGKey(0)
    k_param, k_data = jax.random.split(key)

    B, T, C_in, C_out = 2, 8, 32, 32
    kernel_sizes = [1, 2, 3]

    module = ContextualWordConvolutionPallas(C_in, C_out, kernel_sizes, k_param)
    words = jax.random.normal(k_data, (B, T, C_in), jnp.float32)

    out = jax.block_until_ready(module(words))

    ref = module.reference(words)
    assert out.shape == (B, len(kernel_sizes) * C_out)
    assert jnp.allclose(out, ref, atol=1e-4, rtol=1e-4), "mismatch vs reference"

    print("KERNEL_OK")
</pallas_src>

<mosaic_0001>
module attributes {stable_mosaic.version = 11 : i64} {
  func.func @kernel(%arg0: i32, %arg1: memref<12x8x128xf32, #tpu.memory_space<vmem>>, %arg2: memref<3x128x128xf32, #tpu.memory_space<vmem>>, %arg3: memref<1x128xf32, #tpu.memory_space<vmem>>, %arg4: memref<1x128xi32, #tpu.memory_space<vmem>>, %arg5: memref<128x128xf32, #tpu.memory_space<vmem>>, %arg6: memref<1x128xf32, #tpu.memory_space<vmem>>, %arg7: memref<8x128xf32, #tpu.memory_space<vmem>>) attributes {dimension_semantics = [#tpu.dimension_semantics<parallel>], iteration_bounds = array<i64: 1>, scalar_prefetch = 0 : i64, scratch_operands = 0 : i64, tpu.core_type = #tpu.core_type<tc>, window_params = [{transform_indices = @transform_0, window_bounds = array<i64: 12, 8, 128>}, {pipeline_mode = #tpu.pipeline_mode<synchronous>, transform_indices = @transform_1, window_bounds = array<i64: 3, 128, 128>}, {pipeline_mode = #tpu.pipeline_mode<synchronous>, transform_indices = @transform_2, window_bounds = array<i64: 1, 128>}, {pipeline_mode = #tpu.pipeline_mode<synchronous>, transform_indices = @transform_3, window_bounds = array<i64: 1, 128>}, {pipeline_mode = #tpu.pipeline_mode<synchronous>, transform_indices = @transform_4, window_bounds = array<i64: 128, 128>}, {pipeline_mode = #tpu.pipeline_mode<synchronous>, transform_indices = @transform_5, window_bounds = array<i64: 1, 128>}, {transform_indices = @transform_6, window_bounds = array<i64: 8, 128>}]} {
    %cst = arith.constant 0.000000e+00 : f32
    %0 = vector.broadcast %cst : f32 to vector<80x128xf32>
    %c0 = arith.constant 0 : index
    %c0_0 = arith.constant 0 : index
    %c0_1 = arith.constant 0 : index
    %1 = vector.load %arg1[%c0, %c0_0, %c0_1] : memref<12x8x128xf32, #tpu.memory_space<vmem>>, vector<10x8x128xf32>
    %2 = vector.shape_cast %1 : vector<10x8x128xf32> to vector<80x128xf32>
    %c0_2 = arith.constant 0 : index
    %c0_3 = arith.constant 0 : index
    %c0_4 = arith.constant 0 : index
    %3 = vector.load %arg2[%c0_2, %c0_3, %c0_4] : memref<3x128x128xf32, #tpu.memory_space<vmem>>, vector<1x128x128xf32>
    %4 = vector.shape_cast %3 : vector<1x128x128xf32> to vector<128x128xf32>
    %cst_5 = arith.constant dense<0.000000e+00> : vector<80x128xf32>
    %5 = tpu.matmul %2, %4, %cst_5 {dimension_numbers = #tpu.dot_dimension_numbers<[1], [0], [0], [1], [0, 0, 1, 1], [], []>} : vector<80x128xf32>, vector<128x128xf32>, vector<80x128xf32> -> vector<80x128xf32>
    %6 = arith.addf %0, %5 : vector<80x128xf32>
    %c1 = arith.constant 1 : index
    %c0_6 = arith.constant 0 : index
    %c0_7 = arith.constant 0 : index
    %7 = vector.load %arg1[%c1, %c0_6, %c0_7] : memref<12x8x128xf32, #tpu.memory_space<vmem>>, vector<10x8x128xf32>
    %8 = vector.shape_cast %7 : vector<10x8x128xf32> to vector<80x128xf32>
    %c1_8 = arith.constant 1 : index
    %c0_9 = arith.constant 0 : index
    %c0_10 = arith.constant 0 : index
    %9 = vector.load %arg2[%c1_8, %c0_9, %c0_10] : memref<3x128x128xf32, #tpu.memory_space<vmem>>, vector<1x128x128xf32>
    %10 = vector.shape_cast %9 : vector<1x128x128xf32> to vector<128x128xf32>
    %cst_11 = arith.constant dense<0.000000e+00> : vector<80x128xf32>
    %11 = tpu.matmul %8, %10, %cst_11 {dimension_numbers = #tpu.dot_dimension_numbers<[1], [0], [0], [1], [0, 0, 1, 1], [], []>} : vector<80x128xf32>, vector<128x128xf32>, vector<80x128xf32> -> vector<80x128xf32>
    %12 = arith.addf %6, %11 : vector<80x128xf32>
    %c2 = arith.constant 2 : index
    %c0_12 = arith.constant 0 : index
    %c0_13 = arith.constant 0 : index
    %13 = vector.load %arg1[%c2, %c0_12, %c0_13] : memref<12x8x128xf32, #tpu.memory_space<vmem>>, vector<10x8x128xf32>
    %14 = vector.shape_cast %13 : vector<10x8x128xf32> to vector<80x128xf32>
    %c2_14 = arith.constant 2 : index
    %c0_15 = arith.constant 0 : index
    %c0_16 = arith.constant 0 : index
    %15 = vector.load %arg2[%c2_14, %c0_15, %c0_16] : memref<3x128x128xf32, #tpu.memory_space<vmem>>, vector<1x128x128xf32>
    %16 = vector.shape_cast %15 : vector<1x128x128xf32> to vector<128x128xf32>
    %cst_17 = arith.constant dense<0.000000e+00> : vector<80x128xf32>
    %17 = tpu.matmul %14, %16, %cst_17 {dimension_numbers = #tpu.dot_dimension_numbers<[1], [0], [0], [1], [0, 0, 1, 1], [], []>} : vector<80x128xf32>, vector<128x128xf32>, vector<80x128xf32> -> vector<80x128xf32>
    %18 = arith.addf %12, %17 : vector<80x128xf32>
    %c0_18 = arith.constant 0 : index
    %c0_19 = arith.constant 0 : index
    %19 = vector.load %arg3[%c0_18, %c0_19] : memref<1x128xf32, #tpu.memory_space<vmem>>, vector<1x128xf32>
    %20 = vector.broadcast %19 : vector<1x128xf32> to vector<80x128xf32>
    %21 = arith.addf %18, %20 : vector<80x128xf32>
    %cst_20 = arith.constant 0.000000e+00 : f32
    %22 = vector.broadcast %cst_20 : f32 to vector<80x128xf32>
    %23 = arith.maximumf %21, %22 : vector<80x128xf32>
    %24 = tpu.iota {dimensions = array<i32: 0>} : vector<80x128xi32>
    %c0_21 = arith.constant 0 : index
    %c0_22 = arith.constant 0 : index
    %25 = vector.load %arg4[%c0_21, %c0_22] : memref<1x128xi32, #tpu.memory_space<vmem>>, vector<1x128xi32>
    %c8_i32 = arith.constant 8 : i32
    %26 = vector.broadcast %c8_i32 : i32 to vector<1x128xi32>
    %27 = arith.muli %25, %26 : vector<1x128xi32>
    %28 = vector.broadcast %27 : vector<1x128xi32> to vector<80x128xi32>
    %29 = arith.cmpi sge, %24, %28 : vector<80x128xi32>
    %cst_23 = arith.constant 0.000000e+00 : f32
    %30 = vector.broadcast %cst_23 : f32 to vector<80x128xf32>
    %31 = arith.select %29, %23, %30 : vector<80x128xi1>, vector<80x128xf32>
    %32 = vector.shape_cast %31 : vector<80x128xf32> to vector<10x8x128xf32>
    %cst_24 = arith.constant dense<0xFF800000> : vector<8x128xf32>
    %33 = vector.multi_reduction <maximumf>, %32, %cst_24 [0] : vector<10x8x128xf32> to vector<8x128xf32>
    %c0_25 = arith.constant 0 : index
    %c0_26 = arith.constant 0 : index
    %34 = vector.load %arg5[%c0_25, %c0_26] : memref<128x128xf32, #tpu.memory_space<vmem>>, vector<128x128xf32>
    %cst_27 = arith.constant dense<0.000000e+00> : vector<8x128xf32>
    %35 = tpu.matmul %33, %34, %cst_27 {dimension_numbers = #tpu.dot_dimension_numbers<[1], [0], [0], [1], [0, 0, 1, 1], [], []>} : vector<8x128xf32>, vector<128x128xf32>, vector<8x128xf32> -> vector<8x128xf32>
    %c0_28 = arith.constant 0 : index
    %c0_29 = arith.constant 0 : index
    %36 = vector.load %arg6[%c0_28, %c0_29] : memref<1x128xf32, #tpu.memory_space<vmem>>, vector<1x128xf32>
    %37 = vector.broadcast %36 : vector<1x128xf32> to vector<8x128xf32>
    %38 = arith.addf %35, %37 : vector<8x128xf32>
    %c0_30 = arith.constant 0 : index
    %c0_31 = arith.constant 0 : index
    %39 = vector.load %arg7[%c0_30, %c0_31] : memref<8x128xf32, #tpu.memory_space<vmem>>, vector<8x128xf32>
    tpu.vector_store %arg7[%c0_30, %c0_31], %38 {strides = array<i32>} : memref<8x128xf32, #tpu.memory_space<vmem>>, vector<8x128xf32>,
    return
  }
  func.func @transform_0(%arg0: i32) -> (i32, i32, i32) {
    %c0_i32 = arith.constant 0 : i32
    %c0_i32_0 = arith.constant 0 : i32
    %c0_i32_1 = arith.constant 0 : i32
    return %c0_i32, %arg0, %c0_i32_0 : i32, i32, i32
  }
  func.func @transform_1(%arg0: i32) -> (i32, i32, i32) {
    %c0_i32 = arith.constant 0 : i32
    %c0_i32_0 = arith.constant 0 : i32
    %c0_i32_1 = arith.constant 0 : i32
    %c0_i32_2 = arith.constant 0 : i32
    return %c0_i32, %c0_i32_0, %c0_i32_1 : i32, i32, i32
  }
  func.func @transform_2(%arg0: i32) -> (i32, i32) {
    %c0_i32 = arith.constant 0 : i32
    %c0_i32_0 = arith.constant 0 : i32
    %c0_i32_1 = arith.constant 0 : i32
    return %c0_i32, %c0_i32_0 : i32, i32
  }
  func.func @transform_3(%arg0: i32) -> (i32, i32) {
    %c0_i32 = arith.constant 0 : i32
    %c0_i32_0 = arith.constant 0 : i32
    %c0_i32_1 = arith.constant 0 : i32
    return %c0_i32, %c0_i32_0 : i32, i32
  }
  func.func @transform_4(%arg0: i32) -> (i32, i32) {
    %c0_i32 = arith.constant 0 : i32
    %c0_i32_0 = arith.constant 0 : i32
    %c0_i32_1 = arith.constant 0 : i32
    return %c0_i32, %c0_i32_0 : i32, i32
  }
  func.func @transform_5(%arg0: i32) -> (i32, i32) {
    %c0_i32 = arith.constant 0 : i32
    %c0_i32_0 = arith.constant 0 : i32
    %c0_i32_1 = arith.constant 0 : i32
    return %c0_i32, %c0_i32_0 : i32, i32
  }
  func.func @transform_6(%arg0: i32) -> (i32, i32) {
    %c0_i32 = arith.constant 0 : i32
    %c0_i32_0 = arith.constant 0 : i32
    return %arg0, %c0_i32 : i32, i32
  }
}

</mosaic_0001>

<llo_original>
// kernel: tpu_custom_call.1
$region0: #{tpu_custom_call.1}
  #allocation0 [shape = 'u32[]', space=smem, size = 0x4, offset = 0x4, fixed_abs, tag = 'smem constant byte address 0x4 - core index']
  #allocation1 [shape = 'u32[72,128]{1,0:T(1,128)}', space=vmem, size = 0x9000, scoped, tag = 'internal scratch']
  %s0 = inlined_call_operand.hbm [shape: f32[12,8,128], index: 0, kind: input, shape index: {}]
  %s1 = inlined_call_operand.hbm [shape: f32[3,128,128], index: 1, kind: input, shape index: {}]
  %s2 = inlined_call_operand.vmem [shape: f32[1,128], index: 2, kind: input, shape index: {}]
  %s3 = inlined_call_operand.vmem [shape: s32[1,128], index: 3, kind: input, shape index: {}]
  %s4 = inlined_call_operand.hbm [shape: f32[128,128], index: 4, kind: input, shape index: {}]
  %s5 = inlined_call_operand.vmem [shape: f32[1,128], index: 5, kind: input, shape index: {}]
  %s6 = inlined_call_operand.hbm [shape: f32[8,128], index: 6, kind: output, shape index: {}]
  %s7 = sld [smem:[#allocation0]]
  $region46: #{tpu_custom_call.1} parent=0
    _
  %s9 = ssub.s32 1, %s7
  %s10 = scalar_select 0, %s9, %s7
  $region1: #{tpu_custom_call.1} parent=0
    #allocation2 [shape = 'u8[49152]{0}', space=vmem, size = 0xc000, scoped, tag = 'input window, operand 0, single buffered']
    #allocation3 [shape = 's32[1]{0}', space=sflag, size = 0x4, scoped, tag = 'scoped memory for tpu_custom_call.1']
    #allocation4 [shape = 's32[1]{0}', space=sflag, size = 0x4, scoped, tag = 'scoped memory for tpu_custom_call.1']
    #allocation5 [shape = 'u8[196608]{0}', space=vmem, size = 0x30000, scoped, tag = 'input window, operand 1, single buffered']
    #allocation6 [shape = 's32[1]{0}', space=sflag, size = 0x4, scoped, tag = 'scoped memory for tpu_custom_call.1']
    #allocation7 [shape = 'u8[65536]{0}', space=vmem, size = 0x10000, scoped, tag = 'input window, operand 4, single buffered']
    #allocation8 [shape = 'u8[4096]{0}', space=vmem, size = 0x1000, scoped, tag = 'output window, operand 0, single buffered']
    %11 = vsyncpa [#allocation3], 0
    %12 = vsyncpa [#allocation6], 0
    %13 = vsyncpa [#allocation4], 0
    // Predicated region
    $region2: #{tpu_custom_call.1} parent=1 // pred_check
      _
    $region3: #{tpu_custom_call.1} parent=1 // pred_check_branch
      %15 = sbr.rel (0) target = $region5
    $region4: #{tpu_custom_call.1} parent=1 // pred_region
      %17 = vsyncadd [#allocation3], 0
      %s18 = sshll.u32 %s0, 4
      %s19 = int_to_ptr.hbm [resolvable:$true] %s18
      %s20 = sshll.u32 [#allocation2], 4
      %s21 = int_to_ptr.vmem [resolvable:$true] %s20
      %26 = dma.hbm_to_vmem [thread:$0]  %s19, 1536, %s21, [#allocation3], 128, 128, 8
    $region5: #{tpu_custom_call.1} parent=1 // pred_fallthru
      _
    // Predicated region
    $region6: #{tpu_custom_call.1} parent=1 // pred_check
      _
    $region7: #{tpu_custom_call.1} parent=1 // pred_check_branch
      %28 = sbr.rel (0) target = $region9
    $region8: #{tpu_custom_call.1} parent=1 // pred_region
      %30 = vsyncadd [#allocation6], 0
      %s31 = sshll.u32 %s1, 4
      %s32 = int_to_ptr.hbm [resolvable:$true] %s31
      %s33 = sshll.u32 [#allocation5], 4
      %s34 = int_to_ptr.vmem [resolvable:$true] %s33
      %39 = dma.hbm_to_vmem [thread:$0]  %s32, 6144, %s34, [#allocation6], 128, 128, 8
    $region9: #{tpu_custom_call.1} parent=1 // pred_fallthru
      _
    // Predicated region
    $region10: #{tpu_custom_call.1} parent=1 // pred_check
      _
    $region11: #{tpu_custom_call.1} parent=1 // pred_check_branch
      %41 = sbr.rel (0) target = $region13
    $region12: #{tpu_custom_call.1} parent=1 // pred_region
      _
    $region13: #{tpu_custom_call.1} parent=1 // pred_fallthru
      _
    // Predicated region
    $region14: #{tpu_custom_call.1} parent=1 // pred_check
      _
    $region15: #{tpu_custom_call.1} parent=1 // pred_check_branch
      %43 = sbr.rel (0) target = $region17
    $region16: #{tpu_custom_call.1} parent=1 // pred_region
      _
    $region17: #{tpu_custom_call.1} parent=1 // pred_fallthru
      _
    // Predicated region
    $region18: #{tpu_custom_call.1} parent=1 // pred_check
      _
    $region19: #{tpu_custom_call.1} parent=1 // pred_check_branch
      %45 = sbr.rel (0) target = $region21
    $region20: #{tpu_custom_call.1} parent=1 // pred_region
      %47 = vsyncadd [#allocation6], 0
      %s48 = sshll.u32 %s4, 4
      %s49 = int_to_ptr.hbm [resolvable:$true] %s48
      %s50 = sshll.u32 [#allocation7], 4
      %s51 = int_to_ptr.vmem [resolvable:$true] %s50
      %56 = dma.hbm_to_vmem [thread:$0]  %s49, 2048, %s51, [#allocation6], 128, 128, 8
    $region21: #{tpu_custom_call.1} parent=1 // pred_fallthru
      _
    // Predicated region
    $region22: #{tpu_custom_call.1} parent=1 // pred_check
      _
    $region23: #{tpu_custom_call.1} parent=1 // pred_check_branch
      %58 = sbr.rel (0) target = $region25
    $region24: #{tpu_custom_call.1} parent=1 // pred_region
      _
    $region25: #{tpu_custom_call.1} parent=1 // pred_fallthru
      _
    // Predicated region
    $region26: #{tpu_custom_call.1} parent=1 // pred_check
      _
    $region27: #{tpu_custom_call.1} parent=1 // pred_check_branch
      %60 = sbr.rel (0) target = $region29
    $region28: #{tpu_custom_call.1} parent=1 // pred_region
      %62 = dma.done [#allocation3], 1536
    $region29: #{tpu_custom_call.1} parent=1 // pred_fallthru
      _
    // Predicated region
    $region30: #{tpu_custom_call.1} parent=1 // pred_check
      _
    $region31: #{tpu_custom_call.1} parent=1 // pred_check_branch
      %64 = sbr.rel (0) target = $region33
    $region32: #{tpu_custom_call.1} parent=1 // pred_region
      %66 = dma.done [#allocation6], 6144
    $region33: #{tpu_custom_call.1} parent=1 // pred_fallthru
      _
    // Predicated region
    $region34: #{tpu_custom_call.1} parent=1 // pred_check
      _
    $region35: #{tpu_custom_call.1} parent=1 // pred_check_branch
      %68 = sbr.rel (0) target = $region37
    $region36: #{tpu_custom_call.1} parent=1 // pred_region
      %70 = dma.done [#allocation6], 2048
    $region37: #{tpu_custom_call.1} parent=1 // pred_fallthru
      _
    %v71 = vld [vmem:[#allocation2] sm:$0xff]
    %v72 = vld [vmem:[#allocation2 + $0x8] sm:$0xff]
    %v73 = vld [vmem:[#allocation2 + $0x10] sm:$0xff]
    %v74 = vld [vmem:[#allocation2 + $0x18] sm:$0xff]
    %v75 = vld [vmem:[#allocation2 + $0x20] sm:$0xff]
    %v76 = vld [vmem:[#allocation2 + $0x28] sm:$0xff]
    %v77 = vld [vmem:[#allocation2 + $0x30] sm:$0xff]
    %v78 = vld [vmem:[#allocation2 + $0x38] sm:$0xff]
    %v79 = vld [vmem:[#allocation2 + $0x40] sm:$0xff]
    %v80 = vld [vmem:[#allocation2 + $0x48] sm:$0xff]
    %v81 = vld [vmem:[#allocation5] sm:$0xff]
    %v82 = vld [vmem:[#allocation5 + $0x8] sm:$0xff]
    %v83 = vld [vmem:[#allocation5 + $0x10] sm:$0xff]
    %v84 = vld [vmem:[#allocation5 + $0x18] sm:$0xff]
    %v85 = vld [vmem:[#allocation5 + $0x20] sm:$0xff]
    %v86 = vld [vmem:[#allocation5 + $0x28] sm:$0xff]
    %v87 = vld [vmem:[#allocation5 + $0x30] sm:$0xff]
    %v88 = vld [vmem:[#allocation5 + $0x38] sm:$0xff]
    %v89 = vld [vmem:[#allocation5 + $0x40] sm:$0xff]
    %v90 = vld [vmem:[#allocation5 + $0x48] sm:$0xff]
    %v91 = vld [vmem:[#allocation5 + $0x50] sm:$0xff]
    %v92 = vld [vmem:[#allocation5 + $0x58] sm:$0xff]
    %v93 = vld [vmem:[#allocation5 + $0x60] sm:$0xff]
    %v94 = vld [vmem:[#allocation5 + $0x68] sm:$0xff]
    %v95 = vld [vmem:[#allocation5 + $0x70] sm:$0xff]
    %v96 = vld [vmem:[#allocation5 + $0x78] sm:$0xff]
    %s97 = scalar_lea.vmem [#allocation2], 8
    %v98 = vld [vmem:[%s97] sm:$0xff]
    %v99 = vld [vmem:[%s97 + $0x8] sm:$0xff]
    %v100 = vld [vmem:[%s97 + $0x10] sm:$0xff]
    %v101 = vld [vmem:[%s97 + $0x18] sm:$0xff]
    %v102 = vld [vmem:[%s97 + $0x20] sm:$0xff]
    %v103 = vld [vmem:[%s97 + $0x28] sm:$0xff]
    %v104 = vld [vmem:[%s97 + $0x30] sm:$0xff]
    %v105 = vld [vmem:[%s97 + $0x38] sm:$0xff]
    %v106 = vld [vmem:[%s97 + $0x40] sm:$0xff]
    %v107 = vld [vmem:[%s97 + $0x48] sm:$0xff]
    %s108 = scalar_lea.vmem [#allocation5], 128
    %v109 = vld [vmem:[%s108] sm:$0xff]
    %v110 = vld [vmem:[%s108 + $0x8] sm:$0xff]
    %v111 = vld [vmem:[%s108 + $0x10] sm:$0xff]
    %v112 = vld [vmem:[%s108 + $0x18] sm:$0xff]
    %v113 = vld [vmem:[%s108 + $0x20] sm:$0xff]
    %v114 = vld [vmem:[%s108 + $0x28] sm:$0xff]
    %v115 = vld [vmem:[%s108 + $0x30] sm:$0xff]
    %v116 = vld [vmem:[%s108 + $0x38] sm:$0xff]
    %v117 = vld [vmem:[%s108 + $0x40] sm:$0xff]
    %v118 = vld [vmem:[%s108 + $0x48] sm:$0xff]
    %v119 = vld [vmem:[%s108 + $0x50] sm:$0xff]
    %v120 = vld [vmem:[%s108 + $0x58] sm:$0xff]
    %v121 = vld [vmem:[%s108 + $0x60] sm:$0xff]
    %v122 = vld [vmem:[%s108 + $0x68] sm:$0xff]
    %v123 = vld [vmem:[%s108 + $0x70] sm:$0xff]
    %v124 = vld [vmem:[%s108 + $0x78] sm:$0xff]
    %125 = vmatpush.msra.mxu0 %v124
    %126 = vmatpush.msra.mxu0 %v123
    %127 = vmatpush.msra.mxu0 %v122
    %128 = vmatpush.msra.mxu0 %v121
    %129 = vmatpush.msra.mxu0 %v120
    %130 = vmatpush.msra.mxu0 %v119
    %131 = vmatpush.msra.mxu0 %v118
    %132 = vmatpush.msra.mxu0 %v117
    %133 = vmatpush.msra.mxu0 %v116
    %134 = vmatpush.msra.mxu0 %v115
    %135 = vmatpush.msra.mxu0 %v114
    %136 = vmatpush.msra.mxu0 %v113
    %137 = vmatpush.msra.mxu0 %v112
    %138 = vmatpush.msra.mxu0 %v111
    %139 = vmatpush.msra.mxu0 %v110
    %140 = vmatpush.msra.mxu0 %v109
    %141 = vmatmul.f32.gmra.mxu0 %v98
    %v142 = vpop.f32.mrf.mxu0
    %v143 = vadd.f32 0.0, %v142
    %144 = vmatmul.f32.gmra.mxu0 %v99
    %v145 = vpop.f32.mrf.mxu0
    %v146 = vadd.f32 0.0, %v145
    %147 = vmatmul.f32.gmra.mxu0 %v100
    %v148 = vpop.f32.mrf.mxu0
    %v149 = vadd.f32 0.0, %v148
    %150 = vmatmul.f32.gmra.mxu0 %v101
    %v151 = vpop.f32.mrf.mxu0
    %v152 = vadd.f32 0.0, %v151
    %153 = vmatmul.f32.gmra.mxu0 %v102
    %v154 = vpop.f32.mrf.mxu0
    %v155 = vadd.f32 0.0, %v154
    %156 = vmatmul.f32.gmra.mxu0 %v103
    %v157 = vpop.f32.mrf.mxu0
    %v158 = vadd.f32 0.0, %v157
    %159 = vmatmul.f32.gmra.mxu0 %v104
    %v160 = vpop.f32.mrf.mxu0
    %v161 = vadd.f32 0.0, %v160
    %162 = vmatmul.f32.gmra.mxu0 %v105
    %v163 = vpop.f32.mrf.mxu0
    %v164 = vadd.f32 0.0, %v163
    %165 = vmatmul.f32.gmra.mxu0 %v106
    %v166 = vpop.f32.mrf.mxu0
    %v167 = vadd.f32 0.0, %v166
    %168 = vmatmul.f32.gmra.mxu0 %v107
    %v169 = vpop.f32.mrf.mxu0
    %v170 = vadd.f32 0.0, %v169
    %171 = vdwg.mxu0
    %172 = vmatpush.msra.mxu0 %v96
    %173 = vmatpush.msra.mxu0 %v95
    %174 = vmatpush.msra.mxu0 %v94
    %175 = vmatpush.msra.mxu0 %v93
    %176 = vmatpush.msra.mxu0 %v92
    %177 = vmatpush.msra.mxu0 %v91
    %178 = vmatpush.msra.mxu0 %v90
    %179 = vmatpush.msra.mxu0 %v89
    %180 = vmatpush.msra.mxu0 %v88
    %181 = vmatpush.msra.mxu0 %v87
    %182 = vmatpush.msra.mxu0 %v86
    %183 = vmatpush.msra.mxu0 %v85
    %184 = vmatpush.msra.mxu0 %v84
    %185 = vmatpush.msra.mxu0 %v83
    %186 = vmatpush.msra.mxu0 %v82
    %187 = vmatpush.msra.mxu0 %v81
    %188 = vmatmul.f32.gmra.mxu0 %v71
    %v189 = vpop.f32.mrf.mxu0
    %v190 = vadd.f32 %v143, %v189
    %191 = vmatmul.f32.gmra.mxu0 %v72
    %v192 = vpop.f32.mrf.mxu0
    %v193 = vadd.f32 %v146, %v192
    %194 = vmatmul.f32.gmra.mxu0 %v73
    %v195 = vpop.f32.mrf.mxu0
    %v196 = vadd.f32 %v149, %v195
    %197 = vmatmul.f32.gmra.mxu0 %v74
    %v198 = vpop.f32.mrf.mxu0
    %v199 = vadd.f32 %v152, %v198
    %200 = vmatmul.f32.gmra.mxu0 %v75
    %v201 = vpop.f32.mrf.mxu0
    %v202 = vadd.f32 %v155, %v201
    %203 = vmatmul.f32.gmra.mxu0 %v76
    %v204 = vpop.f32.mrf.mxu0
    %v205 = vadd.f32 %v158, %v204
    %206 = vmatmul.f32.gmra.mxu0 %v77
    %v207 = vpop.f32.mrf.mxu0
    %v208 = vadd.f32 %v161, %v207
    %209 = vmatmul.f32.gmra.mxu0 %v78
    %v210 = vpop.f32.mrf.mxu0
    %v211 = vadd.f32 %v164, %v210
    %212 = vmatmul.f32.gmra.mxu0 %v79
    %v213 = vpop.f32.mrf.mxu0
    %v214 = vadd.f32 %v167, %v213
    %215 = vmatmul.f32.gmra.mxu0 %v80
    %v216 = vpop.f32.mrf.mxu0
    %v217 = vadd.f32 %v170, %v216
    %218 = vdwg.mxu0
    %s219 = scalar_lea.vmem [#allocation2], 16
    %v220 = vld [vmem:[%s219] sm:$0xff]
    %v221 = vld [vmem:[%s219 + $0x8] sm:$0xff]
    %v222 = vld [vmem:[%s219 + $0x10] sm:$0xff]
    %v223 = vld [vmem:[%s219 + $0x18] sm:$0xff]
    %v224 = vld [vmem:[%s219 + $0x20] sm:$0xff]
    %v225 = vld [vmem:[%s219 + $0x28] sm:$0xff]
    %v226 = vld [vmem:[%s219 + $0x30] sm:$0xff]
    %v227 = vld [vmem:[%s219 + $0x38] sm:$0xff]
    %v228 = vld [vmem:[%s219 + $0x40] sm:$0xff]
    %v229 = vld [vmem:[%s219 + $0x48] sm:$0xff]
    %s230 = scalar_lea.vmem [#allocation5], 256
    %v231 = vld [vmem:[%s230] sm:$0xff]
    %v232 = vld [vmem:[%s230 + $0x8] sm:$0xff]
    %v233 = vld [vmem:[%s230 + $0x10] sm:$0xff]
    %v234 = vld [vmem:[%s230 + $0x18] sm:$0xff]
    %v235 = vld [vmem:[%s230 + $0x20] sm:$0xff]
    %v236 = vld [vmem:[%s230 + $0x28] sm:$0xff]
    %v237 = vld [vmem:[%s230 + $0x30] sm:$0xff]
    %v238 = vld [vmem:[%s230 + $0x38] sm:$0xff]
    %v239 = vld [vmem:[%s230 + $0x40] sm:$0xff]
    %v240 = vld [vmem:[%s230 + $0x48] sm:$0xff]
    %v241 = vld [vmem:[%s230 + $0x50] sm:$0xff]
    %v242 = vld [vmem:[%s230 + $0x58] sm:$0xff]
    %v243 = vld [vmem:[%s230 + $0x60] sm:$0xff]
    %v244 = vld [vmem:[%s230 + $0x68] sm:$0xff]
    %v245 = vld [vmem:[%s230 + $0x70] sm:$0xff]
    %v246 = vld [vmem:[%s230 + $0x78] sm:$0xff]
    %247 = vmatpush.msra.mxu0 %v246
    %248 = vmatpush.msra.mxu0 %v245
    %249 = vmatpush.msra.mxu0 %v244
    %250 = vmatpush.msra.mxu0 %v243
    %251 = vmatpush.msra.mxu0 %v242
    %252 = vmatpush.msra.mxu0 %v241
    %253 = vmatpush.msra.mxu0 %v240
    %254 = vmatpush.msra.mxu0 %v239
    %255 = vmatpush.msra.mxu0 %v238
    %256 = vmatpush.msra.mxu0 %v237
    %257 = vmatpush.msra.mxu0 %v236
    %258 = vmatpush.msra.mxu0 %v235
    %259 = vmatpush.msra.mxu0 %v234
    %260 = vmatpush.msra.mxu0 %v233
    %261 = vmatpush.msra.mxu0 %v232
    %262 = vmatpush.msra.mxu0 %v231
    %263 = vmatmul.f32.gmra.mxu0 %v220
    %v264 = vpop.f32.mrf.mxu0
    %v265 = vadd.f32 0.0, %v264
    %266 = vmatmul.f32.gmra.mxu0 %v221
    %v267 = vpop.f32.mrf.mxu0
    %v268 = vadd.f32 0.0, %v267
    %269 = vmatmul.f32.gmra.mxu0 %v222
    %v270 = vpop.f32.mrf.mxu0
    %v271 = vadd.f32 0.0, %v270
    %272 = vmatmul.f32.gmra.mxu0 %v223
    %v273 = vpop.f32.mrf.mxu0
    %v274 = vadd.f32 0.0, %v273
    %275 = vmatmul.f32.gmra.mxu0 %v224
    %v276 = vpop.f32.mrf.mxu0
    %v277 = vadd.f32 0.0, %v276
    %278 = vmatmul.f32.gmra.mxu0 %v225
    %v279 = vpop.f32.mrf.mxu0
    %v280 = vadd.f32 0.0, %v279
    %281 = vmatmul.f32.gmra.mxu0 %v226
    %v282 = vpop.f32.mrf.mxu0
    %v283 = vadd.f32 0.0, %v282
    %284 = vmatmul.f32.gmra.mxu0 %v227
    %v285 = vpop.f32.mrf.mxu0
    %v286 = vadd.f32 0.0, %v285
    %287 = vmatmul.f32.gmra.mxu0 %v228
    %v288 = vpop.f32.mrf.mxu0
    %v289 = vadd.f32 0.0, %v288
    %290 = vmatmul.f32.gmra.mxu0 %v229
    %v291 = vpop.f32.mrf.mxu0
    %v292 = vadd.f32 0.0, %v291
    %293 = vdwg.mxu0
    %v294 = vadd.f32 %v190, %v265
    %v295 = vadd.f32 %v193, %v268
    %v296 = vadd.f32 %v196, %v271
    %v297 = vadd.f32 %v199, %v274
    %v298 = vadd.f32 %v202, %v277
    %v299 = vadd.f32 %v205, %v280
    %v300 = vadd.f32 %v208, %v283
    %v301 = vadd.f32 %v211, %v286
    %v302 = vadd.f32 %v214, %v289
    %v303 = vadd.f32 %v217, %v292
    %v304 = vld [vmem:[%s2] sm:$0x1]
    %v306 = vperm.slane %v304, 0
    %v308 = vadd.f32 %v294, %v306
    %v309 = vadd.f32 %v295, %v306
    %v310 = vadd.f32 %v296, %v306
    %v311 = vadd.f32 %v297, %v306
    %v312 = vadd.f32 %v298, %v306
    %v313 = vadd.f32 %v299, %v306
    %v314 = vadd.f32 %v300, %v306
    %v315 = vadd.f32 %v301, %v306
    %v316 = vadd.f32 %v302, %v306
    %v317 = vadd.f32 %v303, %v306
    %v318 = vmax.f32 %v308, 0.0
    %v319 = vmax.f32 %v309, 0.0
    %v320 = vmax.f32 %v310, 0.0
    %v321 = vmax.f32 %v311, 0.0
    %v322 = vmax.f32 %v312, 0.0
    %v323 = vmax.f32 %v313, 0.0
    %v324 = vmax.f32 %v314, 0.0
    %v325 = vmax.f32 %v315, 0.0
    %v326 = vmax.f32 %v316, 0.0
    %v327 = vmax.f32 %v317, 0.0
    %v328 = vlaneseq
    %v329 = vshrl.u32 %v328, 7
    %v330 = vadd.s32 %v329, 8
    %v331 = vadd.s32 %v329, 16
    %v332 = vadd.s32 %v329, 24
    %v333 = vadd.s32 %v329, 32
    %v334 = vadd.s32 %v329, 40
    %v335 = vadd.s32 %v329, 48
    %v336 = vadd.s32 %v329, 56
    %v337 = vadd.s32 %v329, 64
    %v338 = vadd.s32 %v329, 72
    %v339 = vld [vmem:[%s3] sm:$0x1]
    %v340 = vmul.u32 %v339, 8
    %v341 = vperm.slane %v340, 0
    %vm342 = vcmp.ge.s32.totalorder %v329, %v341
    %vm343 = vcmp.ge.s32.totalorder %v330, %v341
    %vm344 = vcmp.ge.s32.totalorder %v331, %v341
    %vm345 = vcmp.ge.s32.totalorder %v332, %v341
    %vm346 = vcmp.ge.s32.totalorder %v333, %v341
    %vm347 = vcmp.ge.s32.totalorder %v334, %v341
    %vm348 = vcmp.ge.s32.totalorder %v335, %v341
    %vm349 = vcmp.ge.s32.totalorder %v336, %v341
    %vm350 = vcmp.ge.s32.totalorder %v337, %v341
    %vm351 = vcmp.ge.s32.totalorder %v338, %v341
    %v352 = vsel %vm342, %v318, 0.0
    %v353 = vsel %vm343, %v319, 0.0
    %v354 = vsel %vm344, %v320, 0.0
    %v355 = vsel %vm345, %v321, 0.0
    %v356 = vsel %vm346, %v322, 0.0
    %v357 = vsel %vm347, %v323, 0.0
    %v358 = vsel %vm348, %v324, 0.0
    %v359 = vsel %vm349, %v325, 0.0
    %v360 = vsel %vm350, %v326, 0.0
    %v361 = vsel %vm351, %v327, 0.0
    %v362 = vmax.f32 %v352, %v356
    %v363 = vmax.f32 %v353, %v357
    %v364 = vmax.f32 %v354, %v358
    %v365 = vmax.f32 %v355, %v359
    %v366 = vmax.f32 %v362, %v360
    %v367 = vmax.f32 %v363, %v361
    %v368 = vmax.f32 %v366, %v367
    %v369 = vmax.f32 %v364, %v365
    %v370 = vmax.f32 %v368, %v369
    %v371 = vld [vmem:[#allocation7] sm:$0xff]
    %v372 = vld [vmem:[#allocation7 + $0x8] sm:$0xff]
    %v373 = vld [vmem:[#allocation7 + $0x10] sm:$0xff]
    %v374 = vld [vmem:[#allocation7 + $0x18] sm:$0xff]
    %v375 = vld [vmem:[#allocation7 + $0x20] sm:$0xff]
    %v376 = vld [vmem:[#allocation7 + $0x28] sm:$0xff]
    %v377 = vld [vmem:[#allocation7 + $0x30] sm:$0xff]
    %v378 = vld [vmem:[#allocation7 + $0x38] sm:$0xff]
    %v379 = vld [vmem:[#allocation7 + $0x40] sm:$0xff]
    %v380 = vld [vmem:[#allocation7 + $0x48] sm:$0xff]
    %v381 = vld [vmem:[#allocation7 + $0x50] sm:$0xff]
    %v382 = vld [vmem:[#allocation7 + $0x58] sm:$0xff]
    %v383 = vld [vmem:[#allocation7 + $0x60] sm:$0xff]
    %v384 = vld [vmem:[#allocation7 + $0x68] sm:$0xff]
    %v385 = vld [vmem:[#allocation7 + $0x70] sm:$0xff]
    %v386 = vld [vmem:[#allocation7 + $0x78] sm:$0xff]
    %v387 = vld [vmem:[%s5] sm:$0x1]
    %v389 = vperm.slane %v387, 0
    %391 = vmatpush.msra.mxu0 %v386
    %392 = vmatpush.msra.mxu0 %v385
    %393 = vmatpush.msra.mxu0 %v384
    %394 = vmatpush.msra.mxu0 %v383
    %395 = vmatpush.msra.mxu0 %v382
    %396 = vmatpush.msra.mxu0 %v381
    %397 = vmatpush.msra.mxu0 %v380
    %398 = vmatpush.msra.mxu0 %v379
    %399 = vmatpush.msra.mxu0 %v378
    %400 = vmatpush.msra.mxu0 %v377
    %401 = vmatpush.msra.mxu0 %v376
    %402 = vmatpush.msra.mxu0 %v375
    %403 = vmatpush.msra.mxu0 %v374
    %404 = vmatpush.msra.mxu0 %v373
    %405 = vmatpush.msra.mxu0 %v372
    %406 = vmatpush.msra.mxu0 %v371
    %407 = vmatmul.f32.gmra.mxu0 %v370
    %v408 = vpop.f32.mrf.mxu0
    %v409 = vadd.f32 %v389, %v408
    %410 = vdwg.mxu0
    %411 = vst [vmem:[#allocation8] sm:$0xff] %v409
    // Predicated region
    $region38: #{tpu_custom_call.1} parent=1 // pred_check
      _
    $region39: #{tpu_custom_call.1} parent=1 // pred_check_branch
      %413 = sbr.rel (0) target = $region41
    $region40: #{tpu_custom_call.1} parent=1 // pred_region
      %415 = vsyncadd [#allocation4], 0
      %s417 = sshll.u32 [#allocation8], 4
      %s418 = int_to_ptr.vmem [resolvable:$true] %s417
      %s419 = sshll.u32 %s6, 4
      %s420 = int_to_ptr.hbm [resolvable:$true] %s419
      %422 = dma.vmem_to_hbm [thread:$0]  %s418, 128, %s420, [#allocation4]
    $region41: #{tpu_custom_call.1} parent=1 // pred_fallthru
      _
    // Predicated region
    $region42: #{tpu_custom_call.1} parent=1 // pred_check
      _
    $region43: #{tpu_custom_call.1} parent=1 // pred_check_branch
      %424 = sbr.rel (0) target = $region45
    $region44: #{tpu_custom_call.1} parent=1 // pred_region
      %426 = dma.done [#allocation4], 128
    $region45: #{tpu_custom_call.1} parent=1 // pred_fallthru
      _
    %427 = vsyncpa [#allocation3], 1
    %428 = vsyncpa [#allocation6], 1
    %429 = vsyncpa [#allocation4], 1

</llo_original>
